<compile_context>
chip_gen: v6e
topology: v6e:2x2x1
jax: 0.10.0
libtpu: 0.0.40
codegen_flags: <defaults>
</compile_context>

<pallas_src>
import functools

import jax
import jax.numpy as jnp
from jax.experimental import pallas as pl
from jax.experimental.pallas import tpu as pltpu

LANE = 128


def _round_up(n, m):
    return ((n + m - 1) // m) * m


def _dan3_kernel(x_ref, w1_ref, b1_ref, w2_ref, b2_ref, w3_ref, b3_ref, o_ref,
                 *, nc):
    # fc1 + ReLU (f32 MXU accumulation)
    h = jnp.dot(x_ref[...], w1_ref[...], preferred_element_type=jnp.float32)
    h = jnp.maximum(h + b1_ref[...], 0.0)                     # [TB, H]
    # fc2 + ReLU
    h = jnp.dot(h, w2_ref[...], preferred_element_type=jnp.float32)
    h = jnp.maximum(h + b2_ref[...], 0.0)                     # [TB, H]
    # fc3 (w3/b3 are zero-padded to a full 128-lane tile for the MXU)
    logits = jnp.dot(h, w3_ref[...], preferred_element_type=jnp.float32)
    logits = logits + b3_ref[...]                             # [TB, Np]
    # log_softmax over only the real class lanes; padded lanes are ignored.
    logits = logits[:, :nc]                                   # [TB, NC]
    m = jnp.max(logits, axis=-1, keepdims=True)
    shifted = logits - m
    lse = jnp.log(jnp.sum(jnp.exp(shifted), axis=-1, keepdims=True))
    o_ref[...] = (shifted - lse).astype(o_ref.dtype)


def prepare_nn3dan_params(w1, b1, w2, b2, w3, b3):
    """One-time weight prep: transpose to [in, out], lane-pad only fc3.

    Call once and reuse across forward calls (hoisted out of the hot path).
    """
    f32 = jnp.float32
    H, D = w1.shape
    NC = w3.shape[0]
    Np = _round_up(NC, LANE)
    return dict(
        w1=jnp.asarray(w1, f32).T,                              # [D, H]
        b1=jnp.asarray(b1, f32).reshape(1, H),
        w2=jnp.asarray(w2, f32).T,                              # [H, H]
        b2=jnp.asarray(b2, f32).reshape(1, H),
        w3=jnp.zeros((H, Np), f32).at[:, :NC].set(jnp.asarray(w3, f32).T),
        b3=jnp.zeros((1, Np), f32).at[0, :NC].set(jnp.asarray(b3, f32)),
        nc=NC,
    )


def nn3dan_forward(x, params, *, tb=2048):
    """Forward pass of NN3DAN. x: [B, input_size] f32 -> log-probs [B, NC]."""
    B, D = x.shape
    H = params["w1"].shape[1]
    NC = params["nc"]
    Np = params["w3"].shape[1]

    # Batch tile: multiple of 8, capped at tb; for batches big enough to split,
    # pick a tile giving >= 2 grid steps so v7x's second TensorCore is used.
    tb_target = min(tb, max(8, _round_up(pl.cdiv(B, 2), 8)))
    TB = min(tb_target, _round_up(B, 8))
    grid = (pl.cdiv(B, TB),)

    kernel = functools.partial(_dan3_kernel, nc=NC)

    return pl.pallas_call(
        kernel,
        out_shape=jax.ShapeDtypeStruct((B, NC), jnp.float32),
        grid=grid,
        in_specs=[
            pl.BlockSpec((TB, D), lambda i: (i, 0)),   # x tile (pipelined)
            pl.BlockSpec((D, H), lambda i: (0, 0)),    # w1 (VMEM resident)
            pl.BlockSpec((1, H), lambda i: (0, 0)),    # b1
            pl.BlockSpec((H, H), lambda i: (0, 0)),    # w2
            pl.BlockSpec((1, H), lambda i: (0, 0)),    # b2
            pl.BlockSpec((H, Np), lambda i: (0, 0)),   # w3 (lane-padded)
            pl.BlockSpec((1, Np), lambda i: (0, 0)),   # b3
        ],
        out_specs=pl.BlockSpec((TB, NC), lambda i: (i, 0)),
        compiler_params=pltpu.CompilerParams(
            dimension_semantics=("parallel",),         # batch tiles across TCs
            vmem_limit_bytes=32 * 1024 * 1024,
        ),
    )(x.astype(jnp.float32), params["w1"], params["b1"], params["w2"],
      params["b2"], params["w3"], params["b3"])


def _reference(x, w1, b1, w2, b2, w3, b3):
    h = jnp.maximum(x @ w1.T + b1, 0.0)
    h = jnp.maximum(h @ w2.T + b2, 0.0)
    logits = h @ w3.T + b3
    return jax.nn.log_softmax(logits, axis=1)


if __name__ == "__main__":
    key = jax.random.PRNGKey(0)
    B, D, H = 8, 32, 32  # batch, input_size, hidden_size
    kx, k1, k2, k3, k4, k5, k6 = jax.random.split(key, 7)

    x = jax.random.normal(kx, (B, D), dtype=jnp.float32)
    w1 = jax.random.uniform(k1, (H, D), jnp.float32, -0.1, 0.1)
    b1 = jax.random.uniform(k2, (H,), jnp.float32, -0.1, 0.1)
    w2 = jax.random.uniform(k3, (H, H), jnp.float32, -0.1, 0.1)
    b2 = jax.random.uniform(k4, (H,), jnp.float32, -0.1, 0.1)
    w3 = jax.random.uniform(k5, (2, H), jnp.float32, -0.1, 0.1)
    b3 = jax.random.uniform(k6, (2,), jnp.float32, -0.1, 0.1)

    params = prepare_nn3dan_params(w1, b1, w2, b2, w3, b3)  # hoisted weight prep
    out = nn3dan_forward(x, params)
    out = jax.block_until_ready(out)

    ref = _reference(x, w1, b1, w2, b2, w3, b3)
    assert out.shape == (B, 2)
    assert jnp.allclose(out, ref, atol=1e-2, rtol=1e-2), (
        f"max abs diff {jnp.max(jnp.abs(out - ref))}")
    print("KERNEL_OK")
</pallas_src>

<mosaic_0001>
module attributes {stable_mosaic.version = 11 : i64} {
  func.func @_dan3_kernel(%arg0: i32, %arg1: memref<8x32xf32, #tpu.memory_space<vmem>>, %arg2: memref<32x32xf32, #tpu.memory_space<vmem>>, %arg3: memref<1x32xf32, #tpu.memory_space<vmem>>, %arg4: memref<32x32xf32, #tpu.memory_space<vmem>>, %arg5: memref<1x32xf32, #tpu.memory_space<vmem>>, %arg6: memref<32x128xf32, #tpu.memory_space<vmem>>, %arg7: memref<1x128xf32, #tpu.memory_space<vmem>>, %arg8: memref<8x2xf32, #tpu.memory_space<vmem>>) attributes {dimension_semantics = [#tpu.dimension_semantics<parallel>], iteration_bounds = array<i64: 1>, scalar_prefetch = 0 : i64, scratch_operands = 0 : i64, tpu.core_type = #tpu.core_type<tc>, window_params = [{transform_indices = @transform_0, window_bounds = array<i64: 8, 32>}, {pipeline_mode = #tpu.pipeline_mode<synchronous>, transform_indices = @transform_1, window_bounds = array<i64: 32, 32>}, {pipeline_mode = #tpu.pipeline_mode<synchronous>, transform_indices = @transform_2, window_bounds = array<i64: 1, 32>}, {pipeline_mode = #tpu.pipeline_mode<synchronous>, transform_indices = @transform_3, window_bounds = array<i64: 32, 32>}, {pipeline_mode = #tpu.pipeline_mode<synchronous>, transform_indices = @transform_4, window_bounds = array<i64: 1, 32>}, {pipeline_mode = #tpu.pipeline_mode<synchronous>, transform_indices = @transform_5, window_bounds = array<i64: 32, 128>}, {pipeline_mode = #tpu.pipeline_mode<synchronous>, transform_indices = @transform_6, window_bounds = array<i64: 1, 128>}, {transform_indices = @transform_7, window_bounds = array<i64: 8, 2>}]} {
    %c0 = arith.constant 0 : index
    %c0_0 = arith.constant 0 : index
    %0 = vector.load %arg1[%c0, %c0_0] : memref<8x32xf32, #tpu.memory_space<vmem>>, vector<8x32xf32>
    %c0_1 = arith.constant 0 : index
    %c0_2 = arith.constant 0 : index
    %1 = vector.load %arg2[%c0_1, %c0_2] : memref<32x32xf32, #tpu.memory_space<vmem>>, vector<32x32xf32>
    %cst = arith.constant dense<0.000000e+00> : vector<8x32xf32>
    %2 = tpu.matmul %0, %1, %cst {dimension_numbers = #tpu.dot_dimension_numbers<[1], [0], [0], [1], [0, 0, 1, 1], [], []>} : vector<8x32xf32>, vector<32x32xf32>, vector<8x32xf32> -> vector<8x32xf32>
    %c0_3 = arith.constant 0 : index
    %c0_4 = arith.constant 0 : index
    %3 = vector.load %arg3[%c0_3, %c0_4] : memref<1x32xf32, #tpu.memory_space<vmem>>, vector<1x32xf32>
    %4 = vector.broadcast %3 : vector<1x32xf32> to vector<8x32xf32>
    %5 = arith.addf %2, %4 : vector<8x32xf32>
    %cst_5 = arith.constant 0.000000e+00 : f32
    %6 = vector.broadcast %cst_5 : f32 to vector<8x32xf32>
    %7 = arith.maximumf %5, %6 : vector<8x32xf32>
    %c0_6 = arith.constant 0 : index
    %c0_7 = arith.constant 0 : index
    %8 = vector.load %arg4[%c0_6, %c0_7] : memref<32x32xf32, #tpu.memory_space<vmem>>, vector<32x32xf32>
    %cst_8 = arith.constant dense<0.000000e+00> : vector<8x32xf32>
    %9 = tpu.matmul %7, %8, %cst_8 {dimension_numbers = #tpu.dot_dimension_numbers<[1], [0], [0], [1], [0, 0, 1, 1], [], []>} : vector<8x32xf32>, vector<32x32xf32>, vector<8x32xf32> -> vector<8x32xf32>
    %c0_9 = arith.constant 0 : index
    %c0_10 = arith.constant 0 : index
    %10 = vector.load %arg5[%c0_9, %c0_10] : memref<1x32xf32, #tpu.memory_space<vmem>>, vector<1x32xf32>
    %11 = vector.broadcast %10 : vector<1x32xf32> to vector<8x32xf32>
    %12 = arith.addf %9, %11 : vector<8x32xf32>
    %cst_11 = arith.constant 0.000000e+00 : f32
    %13 = vector.broadcast %cst_11 : f32 to vector<8x32xf32>
    %14 = arith.maximumf %12, %13 : vector<8x32xf32>
    %c0_12 = arith.constant 0 : index
    %c0_13 = arith.constant 0 : index
    %15 = vector.load %arg6[%c0_12, %c0_13] : memref<32x128xf32, #tpu.memory_space<vmem>>, vector<32x128xf32>
    %cst_14 = arith.constant dense<0.000000e+00> : vector<8x128xf32>
    %16 = tpu.matmul %14, %15, %cst_14 {dimension_numbers = #tpu.dot_dimension_numbers<[1], [0], [0], [1], [0, 0, 1, 1], [], []>} : vector<8x32xf32>, vector<32x128xf32>, vector<8x128xf32> -> vector<8x128xf32>
    %c0_15 = arith.constant 0 : index
    %c0_16 = arith.constant 0 : index
    %17 = vector.load %arg7[%c0_15, %c0_16] : memref<1x128xf32, #tpu.memory_space<vmem>>, vector<1x128xf32>
    %18 = vector.broadcast %17 : vector<1x128xf32> to vector<8x128xf32>
    %19 = arith.addf %16, %18 : vector<8x128xf32>
    %20 = vector.extract_strided_slice %19 {offsets = [0, 0], sizes = [8, 2], strides = [1, 1]} : vector<8x128xf32> to vector<8x2xf32>
    %cst_17 = arith.constant dense<0xFF800000> : vector<8xf32>
    %21 = vector.multi_reduction <maximumf>, %20, %cst_17 [1] : vector<8x2xf32> to vector<8xf32>
    %22 = vector.shape_cast %21 : vector<8xf32> to vector<8x1xf32>
    %23 = vector.broadcast %22 : vector<8x1xf32> to vector<8x2xf32>
    %24 = arith.subf %20, %23 : vector<8x2xf32>
    %25 = math.exp %24 : vector<8x2xf32>
    %cst_18 = arith.constant dense<0.000000e+00> : vector<8xf32>
    %26 = vector.multi_reduction <add>, %25, %cst_18 [1] : vector<8x2xf32> to vector<8xf32>
    %27 = vector.shape_cast %26 : vector<8xf32> to vector<8x1xf32>
    %28 = math.log %27 : vector<8x1xf32>
    %29 = vector.broadcast %28 : vector<8x1xf32> to vector<8x2xf32>
    %30 = arith.subf %24, %29 : vector<8x2xf32>
    %c0_19 = arith.constant 0 : index
    %c0_20 = arith.constant 0 : index
    %31 = vector.load %arg8[%c0_19, %c0_20] : memref<8x2xf32, #tpu.memory_space<vmem>>, vector<8x2xf32>
    tpu.vector_store %arg8[%c0_19, %c0_20], %30 {strides = array<i32>} : memref<8x2xf32, #tpu.memory_space<vmem>>, vector<8x2xf32>,
    return
  }
  func.func @transform_0(%arg0: i32) -> (i32, i32) {
    %c0_i32 = arith.constant 0 : i32
    %c0_i32_0 = arith.constant 0 : i32
    return %arg0, %c0_i32 : i32, i32
  }
  func.func @transform_1(%arg0: i32) -> (i32, i32) {
    %c0_i32 = arith.constant 0 : i32
    %c0_i32_0 = arith.constant 0 : i32
    %c0_i32_1 = arith.constant 0 : i32
    return %c0_i32, %c0_i32_0 : i32, i32
  }
  func.func @transform_2(%arg0: i32) -> (i32, i32) {
    %c0_i32 = arith.constant 0 : i32
    %c0_i32_0 = arith.constant 0 : i32
    %c0_i32_1 = arith.constant 0 : i32
    return %c0_i32, %c0_i32_0 : i32, i32
  }
  func.func @transform_3(%arg0: i32) -> (i32, i32) {
    %c0_i32 = arith.constant 0 : i32
    %c0_i32_0 = arith.constant 0 : i32
    %c0_i32_1 = arith.constant 0 : i32
    return %c0_i32, %c0_i32_0 : i32, i32
  }
  func.func @transform_4(%arg0: i32) -> (i32, i32) {
    %c0_i32 = arith.constant 0 : i32
    %c0_i32_0 = arith.constant 0 : i32
    %c0_i32_1 = arith.constant 0 : i32
    return %c0_i32, %c0_i32_0 : i32, i32
  }
  func.func @transform_5(%arg0: i32) -> (i32, i32) {
    %c0_i32 = arith.constant 0 : i32
    %c0_i32_0 = arith.constant 0 : i32
    %c0_i32_1 = arith.constant 0 : i32
    return %c0_i32, %c0_i32_0 : i32, i32
  }
  func.func @transform_6(%arg0: i32) -> (i32, i32) {
    %c0_i32 = arith.constant 0 : i32
    %c0_i32_0 = arith.constant 0 : i32
    %c0_i32_1 = arith.constant 0 : i32
    return %c0_i32, %c0_i32_0 : i32, i32
  }
  func.func @transform_7(%arg0: i32) -> (i32, i32) {
    %c0_i32 = arith.constant 0 : i32
    %c0_i32_0 = arith.constant 0 : i32
    return %arg0, %c0_i32 : i32, i32
  }
}

</mosaic_0001>

<llo_original>
// kernel: tpu_custom_call.1
$region0: #{tpu_custom_call.1}
  #allocation0 [shape = 'u32[]', space=smem, size = 0x4, offset = 0x4, fixed_abs, tag = 'smem constant byte address 0x4 - core index']
  #allocation1 [shape = 'u32[144,128]{1,0:T(1,128)}', space=vmem, size = 0x12000, scoped, tag = 'internal scratch']
  %s0 = inlined_call_operand.hbm [shape: f32[8,32], index: 0, kind: input, shape index: {}]
  %s1 = inlined_call_operand.hbm [shape: f32[32,32], index: 1, kind: input, shape index: {}]
  %s2 = inlined_call_operand.vmem [shape: f32[1,32], index: 2, kind: input, shape index: {}]
  %s3 = inlined_call_operand.hbm [shape: f32[32,32], index: 3, kind: input, shape index: {}]
  %s4 = inlined_call_operand.vmem [shape: f32[1,32], index: 4, kind: input, shape index: {}]
  %s5 = inlined_call_operand.hbm [shape: f32[32,128], index: 5, kind: input, shape index: {}]
  %s6 = inlined_call_operand.vmem [shape: f32[1,128], index: 6, kind: input, shape index: {}]
  %s7 = inlined_call_operand.vmem [shape: f32[8,2], index: 7, kind: output, shape index: {}]
  %s8 = sld [smem:[#allocation0]]
  $region54: #{tpu_custom_call.1} parent=0
    _
  %s10 = ssub.s32 1, %s8
  %s11 = scalar_select 0, %s10, %s8
  $region1: #{tpu_custom_call.1} parent=0
    #allocation2 [shape = 'u8[4096]{0}', space=vmem, size = 0x1000, scoped, tag = 'input window, operand 0, single buffered']
    #allocation3 [shape = 's32[1]{0}', space=sflag, size = 0x4, scoped, tag = 'scoped memory for tpu_custom_call.1']
    #allocation4 [shape = 'u8[16384]{0}', space=vmem, size = 0x4000, scoped, tag = 'input window, operand 1, single buffered']
    #allocation5 [shape = 's32[1]{0}', space=sflag, size = 0x4, scoped, tag = 'scoped memory for tpu_custom_call.1']
    #allocation6 [shape = 'u8[16384]{0}', space=vmem, size = 0x4000, scoped, tag = 'input window, operand 3, single buffered']
    #allocation7 [shape = 'u8[16384]{0}', space=vmem, size = 0x4000, scoped, tag = 'input window, operand 5, single buffered']
    #allocation8 [shape = 's32[1]{0}', space=sflag, size = 0x4, scoped, tag = 'scoped memory for tpu_custom_call.1']
    %12 = vsyncpa [#allocation3], 0
    %13 = vsyncpa [#allocation5], 0
    %14 = vsyncpa [#allocation8], 0
    // Predicated region
    $region2: #{tpu_custom_call.1} parent=1 // pred_check
      _
    $region3: #{tpu_custom_call.1} parent=1 // pred_check_branch
      %16 = sbr.rel (0) target = $region5
    $region4: #{tpu_custom_call.1} parent=1 // pred_region
      %s18 = ssub.s32 128, 128
      %19 = vsyncadd [#allocation3], %s18
      %s21 = sshll.u32 [#allocation2], 4
      %s22 = int_to_ptr.vmem [resolvable:$true] %s21
      %24 = dma.hbm_to_vmem [thread:$0]  %s0, 128, %s22, [#allocation3]
    $region5: #{tpu_custom_call.1} parent=1 // pred_fallthru
      _
    // Predicated region
    $region6: #{tpu_custom_call.1} parent=1 // pred_check
      _
    $region7: #{tpu_custom_call.1} parent=1 // pred_check_branch
      %26 = sbr.rel (0) target = $region9
    $region8: #{tpu_custom_call.1} parent=1 // pred_region
      %s28 = ssub.s32 512, 512
      %29 = vsyncadd [#allocation5], %s28
      %s30 = sshll.u32 [#allocation4], 4
      %s31 = int_to_ptr.vmem [resolvable:$true] %s30
      %36 = dma.hbm_to_vmem [thread:$0]  %s1, 512, %s31, [#allocation5], 128, 128, 8
    $region9: #{tpu_custom_call.1} parent=1 // pred_fallthru
      _
    // Predicated region
    $region10: #{tpu_custom_call.1} parent=1 // pred_check
      _
    $region11: #{tpu_custom_call.1} parent=1 // pred_check_branch
      %38 = sbr.rel (0) target = $region13
    $region12: #{tpu_custom_call.1} parent=1 // pred_region
      _
    $region13: #{tpu_custom_call.1} parent=1 // pred_fallthru
      _
    // Predicated region
    $region14: #{tpu_custom_call.1} parent=1 // pred_check
      _
    $region15: #{tpu_custom_call.1} parent=1 // pred_check_branch
      %40 = sbr.rel (0) target = $region17
    $region16: #{tpu_custom_call.1} parent=1 // pred_region
      %s42 = ssub.s32 512, 512
      %43 = vsyncadd [#allocation5], %s42
      %s44 = sshll.u32 [#allocation6], 4
      %s45 = int_to_ptr.vmem [resolvable:$true] %s44
      %50 = dma.hbm_to_vmem [thread:$0]  %s3, 512, %s45, [#allocation5], 128, 128, 8
    $region17: #{tpu_custom_call.1} parent=1 // pred_fallthru
      _
    // Predicated region
    $region18: #{tpu_custom_call.1} parent=1 // pred_check
      _
    $region19: #{tpu_custom_call.1} parent=1 // pred_check_branch
      %52 = sbr.rel (0) target = $region21
    $region20: #{tpu_custom_call.1} parent=1 // pred_region
      _
    $region21: #{tpu_custom_call.1} parent=1 // pred_fallthru
      _
    // Predicated region
    $region22: #{tpu_custom_call.1} parent=1 // pred_check
      _
    $region23: #{tpu_custom_call.1} parent=1 // pred_check_branch
      %54 = sbr.rel (0) target = $region25
    $region24: #{tpu_custom_call.1} parent=1 // pred_region
      %s56 = ssub.s32 512, 512
      %57 = vsyncadd [#allocation8], %s56
      %s58 = sshll.u32 [#allocation7], 4
      %s59 = int_to_ptr.vmem [resolvable:$true] %s58
      %64 = dma.hbm_to_vmem [thread:$0]  %s5, 512, %s59, [#allocation8], 128, 128, 8
    $region25: #{tpu_custom_call.1} parent=1 // pred_fallthru
      _
    // Predicated region
    $region26: #{tpu_custom_call.1} parent=1 // pred_check
      _
    $region27: #{tpu_custom_call.1} parent=1 // pred_check_branch
      %66 = sbr.rel (0) target = $region29
    $region28: #{tpu_custom_call.1} parent=1 // pred_region
      _
    $region29: #{tpu_custom_call.1} parent=1 // pred_fallthru
      _
    // Predicated region
    $region30: #{tpu_custom_call.1} parent=1 // pred_check
      _
    $region31: #{tpu_custom_call.1} parent=1 // pred_check_branch
      %68 = sbr.rel (0) target = $region33
    $region32: #{tpu_custom_call.1} parent=1 // pred_region
      %69 = dma.done [#allocation3], 128
    $region33: #{tpu_custom_call.1} parent=1 // pred_fallthru
      _
    // Predicated region
    $region34: #{tpu_custom_call.1} parent=1 // pred_check
      _
    $region35: #{tpu_custom_call.1} parent=1 // pred_check_branch
      %71 = sbr.rel (0) target = $region37
    $region36: #{tpu_custom_call.1} parent=1 // pred_region
      %72 = dma.done [#allocation5], 512
    $region37: #{tpu_custom_call.1} parent=1 // pred_fallthru
      _
    // Predicated region
    $region38: #{tpu_custom_call.1} parent=1 // pred_check
      _
    $region39: #{tpu_custom_call.1} parent=1 // pred_check_branch
      %74 = sbr.rel (0) target = $region41
    $region40: #{tpu_custom_call.1} parent=1 // pred_region
      %75 = dma.done [#allocation5], 512
    $region41: #{tpu_custom_call.1} parent=1 // pred_fallthru
      _
    // Predicated region
    $region42: #{tpu_custom_call.1} parent=1 // pred_check
      _
    $region43: #{tpu_custom_call.1} parent=1 // pred_check_branch
      %77 = sbr.rel (0) target = $region45
    $region44: #{tpu_custom_call.1} parent=1 // pred_region
      %78 = dma.done [#allocation8], 512
    $region45: #{tpu_custom_call.1} parent=1 // pred_fallthru
      _
    %v79 = vld [vmem:[#allocation2] sm:$0xff]
    %v80 = vld [vmem:[#allocation4] sm:$0xff]
    %v81 = vld [vmem:[#allocation4 + $0x8] sm:$0xff]
    %v82 = vld [vmem:[#allocation4 + $0x10] sm:$0xff]
    %v83 = vld [vmem:[#allocation4 + $0x18] sm:$0xff]
    %v84 = vld [vmem:[%s2] sm:$0x1]
    %v86 = vlaneseq
    %v87 = vshrl.u32 %v86, 7
    %v88 = vsub.s32 0, %v87
    %v89 = vrot.slane %v84, %v88
    %vm91 = vcmask 261120
    %v93 = vsel %vm91, %v79, 0
    %95 = vmatprep.subr.mxu0 0.0
    %96 = vmatpush1.msra.mxu0 0.0
    %97 = vmatprep.subr.mxu0 0.0
    %98 = vmatpush1.msra.mxu0 0.0
    %99 = vmatprep.subr.mxu0 0.0
    %100 = vmatpush1.msra.mxu0 0.0
    %101 = vmatprep.subr.mxu0 0.0
    %102 = vmatpush1.msra.mxu0 0.0
    %103 = vmatprep.subr.mxu0 0.0
    %104 = vmatpush1.msra.mxu0 0.0
    %105 = vmatprep.subr.mxu0 0.0
    %106 = vmatpush1.msra.mxu0 0.0
    %107 = vmatprep.subr.mxu0 0.0
    %108 = vmatpush1.msra.mxu0 0.0
    %109 = vmatprep.subr.mxu0 0.0
    %110 = vmatpush1.msra.mxu0 0.0
    %111 = vmatprep.subr.mxu0 0.0
    %112 = vmatpush1.msra.mxu0 0.0
    %113 = vmatprep.subr.mxu0 0.0
    %114 = vmatpush1.msra.mxu0 0.0
    %115 = vmatprep.subr.mxu0 0.0
    %116 = vmatpush1.msra.mxu0 0.0
    %117 = vmatprep.subr.mxu0 0.0
    %118 = vmatpush1.msra.mxu0 0.0
    %119 = vmatprep.subr.mxu0 0.0
    %120 = vmatpush1.msra.mxu0 %v83
    %121 = vmatprep.subr.mxu0 0.0
    %122 = vmatpush1.msra.mxu0 %v82
    %123 = vmatprep.subr.mxu0 0.0
    %124 = vmatpush1.msra.mxu0 %v81
    %125 = vmatprep.subr.mxu0 0.0
    %126 = vmatpush1.msra.mxu0 %v80
    %127 = vmatprep.subr.mxu0 0.0
    %128 = vmatpush2.msra.mxu0 0.0
    %129 = vmatprep.subr.mxu0 0.0
    %130 = vmatpush2.msra.mxu0 0.0
    %131 = vmatprep.subr.mxu0 0.0
    %132 = vmatpush2.msra.mxu0 0.0
    %133 = vmatprep.subr.mxu0 0.0
    %134 = vmatpush2.msra.mxu0 0.0
    %135 = vmatprep.subr.mxu0 0.0
    %136 = vmatpush2.msra.mxu0 0.0
    %137 = vmatprep.subr.mxu0 0.0
    %138 = vmatpush2.msra.mxu0 0.0
    %139 = vmatprep.subr.mxu0 0.0
    %140 = vmatpush2.msra.mxu0 0.0
    %141 = vmatprep.subr.mxu0 0.0
    %142 = vmatpush2.msra.mxu0 0.0
    %143 = vmatprep.subr.mxu0 0.0
    %144 = vmatpush2.msra.mxu0 0.0
    %145 = vmatprep.subr.mxu0 0.0
    %146 = vmatpush2.msra.mxu0 0.0
    %147 = vmatprep.subr.mxu0 0.0
    %148 = vmatpush2.msra.mxu0 0.0
    %149 = vmatprep.subr.mxu0 0.0
    %150 = vmatpush2.msra.mxu0 0.0
    %151 = vmatprep.subr.mxu0 0.0
    %152 = vmatpush2.msra.mxu0 0.0
    %153 = vmatprep.subr.mxu0 0.0
    %154 = vmatpush2.msra.mxu0 0.0
    %155 = vmatprep.subr.mxu0 0.0
    %156 = vmatpush2.msra.mxu0 0.0
    %157 = vmatprep.subr.mxu0 0.0
    %158 = vmatpush2.msra.mxu0 0.0
    %159 = vmatprep.mubr.f32.mxu0 0.0
    %160 = vmatmul.mubr.f32.gmra.mxu0 %v93
    %v161 = vpop.f32.mrf.mxu0
    %v162 = vadd.f32 %v89, %v161
    %v163 = vpop.f32.mrf.mxu0
    %164 = vdwg.mxu0
    %v165 = vmax.f32 %v162, 0.0
    %v166 = vld [vmem:[#allocation6] sm:$0xff]
    %v167 = vld [vmem:[#allocation6 + $0x8] sm:$0xff]
    %v168 = vld [vmem:[#allocation6 + $0x10] sm:$0xff]
    %v169 = vld [vmem:[#allocation6 + $0x18] sm:$0xff]
    %v170 = vld [vmem:[%s4] sm:$0x1]
    %v172 = vlaneseq
    %v173 = vshrl.u32 %v172, 7
    %v174 = vsub.s32 0, %v173
    %v175 = vrot.slane %v170, %v174
    %v178 = vsel %vm91, %v165, 0
    %180 = vmatprep.subr.mxu0 0.0
    %181 = vmatpush1.msra.mxu0 0.0
    %182 = vmatprep.subr.mxu0 0.0
    %183 = vmatpush1.msra.mxu0 0.0
    %184 = vmatprep.subr.mxu0 0.0
    %185 = vmatpush1.msra.mxu0 0.0
    %186 = vmatprep.subr.mxu0 0.0
    %187 = vmatpush1.msra.mxu0 0.0
    %188 = vmatprep.subr.mxu0 0.0
    %189 = vmatpush1.msra.mxu0 0.0
    %190 = vmatprep.subr.mxu0 0.0
    %191 = vmatpush1.msra.mxu0 0.0
    %192 = vmatprep.subr.mxu0 0.0
    %193 = vmatpush1.msra.mxu0 0.0
    %194 = vmatprep.subr.mxu0 0.0
    %195 = vmatpush1.msra.mxu0 0.0
    %196 = vmatprep.subr.mxu0 0.0
    %197 = vmatpush1.msra.mxu0 0.0
    %198 = vmatprep.subr.mxu0 0.0
    %199 = vmatpush1.msra.mxu0 0.0
    %200 = vmatprep.subr.mxu0 0.0
    %201 = vmatpush1.msra.mxu0 0.0
    %202 = vmatprep.subr.mxu0 0.0
    %203 = vmatpush1.msra.mxu0 0.0
    %204 = vmatprep.subr.mxu0 0.0
    %205 = vmatpush1.msra.mxu0 %v169
    %206 = vmatprep.subr.mxu0 0.0
    %207 = vmatpush1.msra.mxu0 %v168
    %208 = vmatprep.subr.mxu0 0.0
    %209 = vmatpush1.msra.mxu0 %v167
    %210 = vmatprep.subr.mxu0 0.0
    %211 = vmatpush1.msra.mxu0 %v166
    %212 = vmatprep.subr.mxu0 0.0
    %213 = vmatpush2.msra.mxu0 0.0
    %214 = vmatprep.subr.mxu0 0.0
    %215 = vmatpush2.msra.mxu0 0.0
    %216 = vmatprep.subr.mxu0 0.0
    %217 = vmatpush2.msra.mxu0 0.0
    %218 = vmatprep.subr.mxu0 0.0
    %219 = vmatpush2.msra.mxu0 0.0
    %220 = vmatprep.subr.mxu0 0.0
    %221 = vmatpush2.msra.mxu0 0.0
    %222 = vmatprep.subr.mxu0 0.0
    %223 = vmatpush2.msra.mxu0 0.0
    %224 = vmatprep.subr.mxu0 0.0
    %225 = vmatpush2.msra.mxu0 0.0
    %226 = vmatprep.subr.mxu0 0.0
    %227 = vmatpush2.msra.mxu0 0.0
    %228 = vmatprep.subr.mxu0 0.0
    %229 = vmatpush2.msra.mxu0 0.0
    %230 = vmatprep.subr.mxu0 0.0
    %231 = vmatpush2.msra.mxu0 0.0
    %232 = vmatprep.subr.mxu0 0.0
    %233 = vmatpush2.msra.mxu0 0.0
    %234 = vmatprep.subr.mxu0 0.0
    %235 = vmatpush2.msra.mxu0 0.0
    %236 = vmatprep.subr.mxu0 0.0
    %237 = vmatpush2.msra.mxu0 0.0
    %238 = vmatprep.subr.mxu0 0.0
    %239 = vmatpush2.msra.mxu0 0.0
    %240 = vmatprep.subr.mxu0 0.0
    %241 = vmatpush2.msra.mxu0 0.0
    %242 = vmatprep.subr.mxu0 0.0
    %243 = vmatpush2.msra.mxu0 0.0
    %244 = vmatprep.mubr.f32.mxu0 0.0
    %245 = vmatmul.mubr.f32.gmra.mxu0 %v178
    %v246 = vpop.f32.mrf.mxu0
    %v247 = vadd.f32 %v175, %v246
    %v248 = vpop.f32.mrf.mxu0
    %249 = vdwg.mxu0
    %v250 = vmax.f32 %v247, 0.0
    %v251 = vld [vmem:[#allocation7] sm:$0xff]
    %v252 = vld [vmem:[#allocation7 + $0x8] sm:$0xff]
    %v253 = vld [vmem:[#allocation7 + $0x10] sm:$0xff]
    %v254 = vld [vmem:[#allocation7 + $0x18] sm:$0xff]
    %v255 = vld [vmem:[%s6] sm:$0x1]
    %v257 = vlaneseq
    %v258 = vshrl.u32 %v257, 7
    %v259 = vsub.s32 0, %v258
    %v260 = vrot.slane %v255, %v259
    %v263 = vsel %vm91, %v250, 0
    %265 = vmatprep.subr.mxu0 0.0
    %266 = vmatpush1.msra.mxu0 0.0
    %267 = vmatprep.subr.mxu0 0.0
    %268 = vmatpush1.msra.mxu0 0.0
    %269 = vmatprep.subr.mxu0 0.0
    %270 = vmatpush1.msra.mxu0 0.0
    %271 = vmatprep.subr.mxu0 0.0
    %272 = vmatpush1.msra.mxu0 0.0
    %273 = vmatprep.subr.mxu0 0.0
    %274 = vmatpush1.msra.mxu0 0.0
    %275 = vmatprep.subr.mxu0 0.0
    %276 = vmatpush1.msra.mxu0 0.0
    %277 = vmatprep.subr.mxu0 0.0
    %278 = vmatpush1.msra.mxu0 0.0
    %279 = vmatprep.subr.mxu0 0.0
    %280 = vmatpush1.msra.mxu0 0.0
    %281 = vmatprep.subr.mxu0 0.0
    %282 = vmatpush1.msra.mxu0 0.0
    %283 = vmatprep.subr.mxu0 0.0
    %284 = vmatpush1.msra.mxu0 0.0
    %285 = vmatprep.subr.mxu0 0.0
    %286 = vmatpush1.msra.mxu0 0.0
    %287 = vmatprep.subr.mxu0 0.0
    %288 = vmatpush1.msra.mxu0 0.0
    %289 = vmatprep.subr.mxu0 0.0
    %290 = vmatpush1.msra.mxu0 %v254
    %291 = vmatprep.subr.mxu0 0.0
    %292 = vmatpush1.msra.mxu0 %v253
    %293 = vmatprep.subr.mxu0 0.0
    %294 = vmatpush1.msra.mxu0 %v252
    %295 = vmatprep.subr.mxu0 0.0
    %296 = vmatpush1.msra.mxu0 %v251
    %297 = vmatprep.subr.mxu0 0.0
    %298 = vmatpush2.msra.mxu0 0.0
    %299 = vmatprep.subr.mxu0 0.0
    %300 = vmatpush2.msra.mxu0 0.0
    %301 = vmatprep.subr.mxu0 0.0
    %302 = vmatpush2.msra.mxu0 0.0
    %303 = vmatprep.subr.mxu0 0.0
    %304 = vmatpush2.msra.mxu0 0.0
    %305 = vmatprep.subr.mxu0 0.0
    %306 = vmatpush2.msra.mxu0 0.0
    %307 = vmatprep.subr.mxu0 0.0
    %308 = vmatpush2.msra.mxu0 0.0
    %309 = vmatprep.subr.mxu0 0.0
    %310 = vmatpush2.msra.mxu0 0.0
    %311 = vmatprep.subr.mxu0 0.0
    %312 = vmatpush2.msra.mxu0 0.0
    %313 = vmatprep.subr.mxu0 0.0
    %314 = vmatpush2.msra.mxu0 0.0
    %315 = vmatprep.subr.mxu0 0.0
    %316 = vmatpush2.msra.mxu0 0.0
    %317 = vmatprep.subr.mxu0 0.0
    %318 = vmatpush2.msra.mxu0 0.0
    %319 = vmatprep.subr.mxu0 0.0
    %320 = vmatpush2.msra.mxu0 0.0
    %321 = vmatprep.subr.mxu0 0.0
    %322 = vmatpush2.msra.mxu0 0.0
    %323 = vmatprep.subr.mxu0 0.0
    %324 = vmatpush2.msra.mxu0 0.0
    %325 = vmatprep.subr.mxu0 0.0
    %326 = vmatpush2.msra.mxu0 0.0
    %327 = vmatprep.subr.mxu0 0.0
    %328 = vmatpush2.msra.mxu0 0.0
    %329 = vmatprep.mubr.f32.mxu0 0.0
    %330 = vmatmul.mubr.f32.gmra.mxu0 %v263
    %v331 = vpop.f32.mrf.mxu0
    %v332 = vadd.f32 %v260, %v331
    %v333 = vpop.f32.mrf.mxu0
    %334 = vdwg.mxu0
    %vm335 = vcmask 15360
    %v336 = vsel %vm335, %v332, -inf
    %337 = vmax.xlane.f32.xlu0 %v336
    %v338 = vpop.xlane.xlu0 %337
    %v339 = vsub.f32 %v332, %v338
    %v340 = vmul.f32 %v339, 1.442695
    %v341 = vpow.pop %v340
    %v342 = vsel %vm335, %v341, 0.0
    %343 = vadd.xlane.f32.xlu0 %v342
    %v344 = vpop.xlane.xlu0 %343
    %v345 = vlog2.pop %v344
    %v346 = vmul.f32 %v345, 0.6931472
    %v347 = vsub.f32 %v339, %v346
    %348 = vst.msk [vmem:[%s7] sm:$0xff] %vm335, %v347
    // Predicated region
    $region46: #{tpu_custom_call.1} parent=1 // pred_check
      _
    $region47: #{tpu_custom_call.1} parent=1 // pred_check_branch
      %350 = sbr.rel (0) target = $region49
    $region48: #{tpu_custom_call.1} parent=1 // pred_region
      _
    $region49: #{tpu_custom_call.1} parent=1 // pred_fallthru
      _
    // Predicated region
    $region50: #{tpu_custom_call.1} parent=1 // pred_check
      _
    $region51: #{tpu_custom_call.1} parent=1 // pred_check_branch
      %352 = sbr.rel (0) target = $region53
    $region52: #{tpu_custom_call.1} parent=1 // pred_region
      _
    $region53: #{tpu_custom_call.1} parent=1 // pred_fallthru
      _
    %353 = vsyncpa [#allocation3], 1
    %354 = vsyncpa [#allocation5], 1
    %355 = vsyncpa [#allocation8], 1

</llo_original>
